<compile_context>
chip_gen: v5e
topology: v5e:2x2
jax: 0.10.0
libtpu: 0.0.40
codegen_flags: <defaults>
</compile_context>

<pallas_src>
import jax
import jax.numpy as jnp
from jax.experimental import pallas as pl
from jax.experimental.pallas import tpu as pltpu


def _round_up(x, m):
    return ((x + m - 1) // m) * m


# --------------------------------------------------------------------------- #
# Kernels
# --------------------------------------------------------------------------- #
def _ar_kernel_kron(wk_ref, bk_ref, x_ref, o_ref):
    # wk_ref: (window*V, stride*V)  -- kron'd weights, resident (constant index_map)
    # bk_ref: (1, stride*V)         -- bias repeated per variable, resident
    # x_ref : (TB, window*V)        -- TB samples, native contiguous rows
    # o_ref : (TB, stride*V)
    acc = jnp.dot(x_ref[...], wk_ref[...], preferred_element_type=jnp.float32)
    o_ref[...] = (acc + bk_ref[...]).astype(o_ref.dtype)


def _ar_kernel_native(w_ref, b_ref, x_ref, o_ref):
    # w_ref: (window, stride)   -- resident
    # b_ref: (stride, 1)        -- resident
    # x_ref: (window, TILE_V)   -- one sample's native (window, vars) slab chunk
    # o_ref: (stride, TILE_V)
    acc = jax.lax.dot_general(
        w_ref[...], x_ref[...],
        dimension_numbers=(((0,), (0,)), ((), ())),   # contract over `window`
        preferred_element_type=jnp.float32,           # f32 accumulation on MXU
    )
    o_ref[...] = (acc + b_ref[...]).astype(o_ref.dtype)


# --------------------------------------------------------------------------- #
# Wrappers
# --------------------------------------------------------------------------- #
def _forward_kron(x, weights, bias, target_step_bytes):
    B, window, V = x.shape
    _, stride = weights.shape
    dtype = x.dtype
    itemsize = jnp.dtype(dtype).itemsize

    # Fold the per-variable identity into the weights (tiny for small V):
    #   Wk[w*V + v, d*V + v'] = weights[w, d] * (v == v')
    wk = jnp.kron(weights, jnp.eye(V, dtype=weights.dtype))        # (W*V, S*V)
    bk = jnp.repeat(bias[:, 0], V)[None, :]                        # (1, S*V)

    # Free (bitcast) views of the native layout -> no extra HBM passes.
    x2 = x.reshape(B, window * V)

    # Pick the batch tile so each grid step streams ~target_step_bytes of HBM
    # (input rows + output rows). ~6 MiB/step => per-step pipeline overhead of
    # ~0.35 us is <10% of HBM time on v5e/v6e and ~16% on v7x.
    bytes_per_row = (window + stride) * V * itemsize
    tb = max(8, target_step_bytes // bytes_per_row)
    tb = _round_up(tb, 8)
    if B >= 16:
        # Keep at least 2 grid steps so megacore (v7x) gets both cores busy.
        tb = min(tb, _round_up(pl.cdiv(B, 2), 8))
    if tb >= B:
        tb = B                       # full-dim block is always legal
    grid = (pl.cdiv(B, tb),)         # ragged last block handled by Pallas

    cost = pl.CostEstimate(
        flops=2 * B * (window * V) * (stride * V),   # MXU flops actually issued
        transcendentals=0,
        bytes_accessed=(x.size + wk.size + bk.size + B * stride * V) * itemsize,
    )

    out2 = pl.pallas_call(
        _ar_kernel_kron,
        out_shape=jax.ShapeDtypeStruct((B, stride * V), dtype),
        grid_spec=pltpu.PrefetchScalarGridSpec(
            num_scalar_prefetch=0,
            grid=grid,
            in_specs=[
                pl.BlockSpec((window * V, stride * V), lambda i: (0, 0)),  # Wk
                pl.BlockSpec((1, stride * V), lambda i: (0, 0)),           # bias
                pl.BlockSpec((tb, window * V), lambda i: (i, 0)),          # x rows
            ],
            out_specs=pl.BlockSpec((tb, stride * V), lambda i: (i, 0)),
        ),
        compiler_params=pltpu.CompilerParams(
            dimension_semantics=("parallel",),
            vmem_limit_bytes=32 * 1024 * 1024,
        ),
        cost_estimate=cost,
    )(wk, bk, x2)

    return out2.reshape(B, stride, V)      # free view back to (B, stride, V)


def _forward_native(x, weights, bias, target_step_bytes):
    # Fallback for large V: read x in native (B, window, V) layout, one sample
    # per batch-grid step, lane-dense V chunks. No transposes, no kron blow-up.
    # (For moderate V this path is per-step-overhead limited, but it is only
    # taken when the kron'd weight would be too large for VMEM / MXU budget.)
    B, window, V = x.shape
    _, stride = weights.shape
    dtype = x.dtype
    itemsize = jnp.dtype(dtype).itemsize

    tv = target_step_bytes // ((window + stride) * itemsize)
    tv = max(128, (tv // 128) * 128)
    if tv >= V:
        tv = V                        # full-dim block is always legal
    grid = (B, pl.cdiv(V, tv))

    cost = pl.CostEstimate(
        flops=2 * B * window * stride * V,
        transcendentals=0,
        bytes_accessed=(x.size + weights.size + bias.size + B * stride * V) * itemsize,
    )

    return pl.pallas_call(
        _ar_kernel_native,
        out_shape=jax.ShapeDtypeStruct((B, stride, V), dtype),
        grid_spec=pltpu.PrefetchScalarGridSpec(
            num_scalar_prefetch=0,
            grid=grid,
            in_specs=[
                pl.BlockSpec((window, stride), lambda b, v: (0, 0)),
                pl.BlockSpec((stride, 1), lambda b, v: (0, 0)),
                pl.BlockSpec((None, window, tv), lambda b, v: (b, 0, v)),
            ],
            out_specs=pl.BlockSpec((None, stride, tv), lambda b, v: (b, 0, v)),
        ),
        compiler_params=pltpu.CompilerParams(
            dimension_semantics=("parallel", "parallel"),
            vmem_limit_bytes=32 * 1024 * 1024,
        ),
        cost_estimate=cost,
    )(weights, bias, x)


def autoregression_forward(x, weights, bias, *, target_step_bytes=6 * 1024 * 1024):
    """x: (B, window, vars), weights: (window, stride), bias: (stride, 1).

    Returns (B, stride, vars) == einsum('wd,awc->adc', weights, x) + bias.
    """
    B, window, V = x.shape
    window_w, stride = weights.shape
    assert window_w == window
    assert bias.shape == (stride, 1)

    itemsize = jnp.dtype(x.dtype).itemsize
    kron_bytes = window * V * stride * V * jnp.dtype(weights.dtype).itemsize
    # MXU flops per HBM byte of the kron formulation; keep it well under the
    # f32 MXU/HBM roofline (~170 flop/byte on v6e) so compute stays hidden.
    kron_intensity = (window * stride * V) / ((window + stride) * itemsize)
    use_kron = (kron_bytes <= 4 * 1024 * 1024) and (kron_intensity <= 128.0)

    if use_kron:
        return _forward_kron(x, weights, bias, target_step_bytes)
    return _forward_native(x, weights, bias, target_step_bytes)


def init_autoregression_params(key, window, stride, bias=True, dtype=jnp.float32):
    """Matches the PyTorch module: xavier_uniform weights (window, stride),
    zeros bias (stride, 1). `bias=False` only freezes grads in torch; the
    forward value is identical, so nothing changes here."""
    bound = (6.0 / (window + stride)) ** 0.5
    weights = jax.random.uniform(
        key, (window, stride), dtype=dtype, minval=-bound, maxval=bound
    )
    b = jnp.zeros((stride, 1), dtype=dtype)
    return weights, b


if __name__ == "__main__":
    # Small shapes implied by the module: samples=2, window=8, stride=4, vars=16
    B, window, stride, V = 2, 8, 4, 16

    key = jax.random.PRNGKey(0)
    kx, kw = jax.random.split(key)

    x = jax.random.normal(kx, (B, window, V), dtype=jnp.float32)
    weights, bias = init_autoregression_params(kw, window, stride, bias=True)

    out = autoregression_forward(x, weights, bias)
    out = jax.block_until_ready(out)

    # Reference check (plain JAX einsum, mirrors torch.einsum('bd,abc->adc'))
    ref = jnp.einsum("bd,abc->adc", weights, x) + bias
    assert out.shape == (B, stride, V)
    assert jnp.allclose(out, ref, atol=1e-5, rtol=1e-5)

    print("KERNEL_OK")
</pallas_src>

<mosaic_0001>
module attributes {stable_mosaic.version = 11 : i64} {
  func.func @_ar_kernel_kron(%arg0: i32, %arg1: memref<128x64xf32, #tpu.memory_space<vmem>>, %arg2: memref<1x64xf32, #tpu.memory_space<vmem>>, %arg3: memref<2x128xf32, #tpu.memory_space<vmem>>, %arg4: memref<2x64xf32, #tpu.memory_space<vmem>>) attributes {dimension_semantics = [#tpu.dimension_semantics<parallel>], iteration_bounds = array<i64: 1>, scalar_prefetch = 0 : i64, scratch_operands = 0 : i64, tpu.core_type = #tpu.core_type<tc>, window_params = [{pipeline_mode = #tpu.pipeline_mode<synchronous>, transform_indices = @transform_0, window_bounds = array<i64: 128, 64>}, {pipeline_mode = #tpu.pipeline_mode<synchronous>, transform_indices = @transform_1, window_bounds = array<i64: 1, 64>}, {transform_indices = @transform_2, window_bounds = array<i64: 2, 128>}, {transform_indices = @transform_3, window_bounds = array<i64: 2, 64>}]} {
    %c0 = arith.constant 0 : index
    %c0_0 = arith.constant 0 : index
    %0 = vector.load %arg3[%c0, %c0_0] : memref<2x128xf32, #tpu.memory_space<vmem>>, vector<2x128xf32>
    %c0_1 = arith.constant 0 : index
    %c0_2 = arith.constant 0 : index
    %1 = vector.load %arg1[%c0_1, %c0_2] : memref<128x64xf32, #tpu.memory_space<vmem>>, vector<128x64xf32>
    %cst = arith.constant dense<0.000000e+00> : vector<2x64xf32>
    %2 = tpu.matmul %0, %1, %cst {dimension_numbers = #tpu.dot_dimension_numbers<[1], [0], [0], [1], [0, 0, 1, 1], [], []>} : vector<2x128xf32>, vector<128x64xf32>, vector<2x64xf32> -> vector<2x64xf32>
    %c0_3 = arith.constant 0 : index
    %c0_4 = arith.constant 0 : index
    %3 = vector.load %arg2[%c0_3, %c0_4] : memref<1x64xf32, #tpu.memory_space<vmem>>, vector<1x64xf32>
    %4 = vector.broadcast %3 : vector<1x64xf32> to vector<2x64xf32>
    %5 = arith.addf %2, %4 : vector<2x64xf32>
    %c0_5 = arith.constant 0 : index
    %c0_6 = arith.constant 0 : index
    %6 = vector.load %arg4[%c0_5, %c0_6] : memref<2x64xf32, #tpu.memory_space<vmem>>, vector<2x64xf32>
    tpu.vector_store %arg4[%c0_5, %c0_6], %5 {strides = array<i32>} : memref<2x64xf32, #tpu.memory_space<vmem>>, vector<2x64xf32>,
    return
  }
  func.func @transform_0(%arg0: i32) -> (i32, i32) {
    %c0_i32 = arith.constant 0 : i32
    %c0_i32_0 = arith.constant 0 : i32
    %c0_i32_1 = arith.constant 0 : i32
    return %c0_i32, %c0_i32_0 : i32, i32
  }
  func.func @transform_1(%arg0: i32) -> (i32, i32) {
    %c0_i32 = arith.constant 0 : i32
    %c0_i32_0 = arith.constant 0 : i32
    %c0_i32_1 = arith.constant 0 : i32
    return %c0_i32, %c0_i32_0 : i32, i32
  }
  func.func @transform_2(%arg0: i32) -> (i32, i32) {
    %c0_i32 = arith.constant 0 : i32
    %c0_i32_0 = arith.constant 0 : i32
    return %arg0, %c0_i32 : i32, i32
  }
  func.func @transform_3(%arg0: i32) -> (i32, i32) {
    %c0_i32 = arith.constant 0 : i32
    %c0_i32_0 = arith.constant 0 : i32
    return %arg0, %c0_i32 : i32, i32
  }
}

</mosaic_0001>

<llo_original>
// kernel: tpu_custom_call.1
$region0: #{tpu_custom_call.1}
  #allocation0 [shape = 'u32[]', space=smem, size = 0x4, offset = 0x4, fixed_abs, tag = 'smem constant byte address 0x4 - core index']
  #allocation1 [shape = 'u32[72,128]{1,0:T(1,128)}', space=vmem, size = 0x9000, scoped, tag = 'internal scratch']
  %s0 = inlined_call_operand.vmem [shape: f32[128,64], index: 0, kind: input, shape index: {}]
  %s1 = inlined_call_operand.vmem [shape: f32[1,64], index: 1, kind: input, shape index: {}]
  %s2 = inlined_call_operand.vmem [shape: f32[2,128], index: 2, kind: input, shape index: {}]
  %s3 = inlined_call_operand.hbm [shape: f32[2,64], index: 3, kind: output, shape index: {}]
  %s4 = sld [smem:[#allocation0]]
  $region22: #{tpu_custom_call.1} parent=0
    _
  %s6 = ssub.s32 1, %s4
  %s7 = scalar_select 0, %s6, %s4
  $region1: #{tpu_custom_call.1} parent=0
    #allocation2 [shape = 'u8[1024]{0}', space=vmem, size = 0x400, scoped, tag = 'output window, operand 0, single buffered']
    #allocation3 [shape = 's32[1]{0}', space=sflag, size = 0x4, scoped, tag = 'scoped memory for tpu_custom_call.1']
    %8 = vsyncpa [#allocation3], 0
    // Predicated region
    $region2: #{tpu_custom_call.1} parent=1 // pred_check
      _
    $region3: #{tpu_custom_call.1} parent=1 // pred_check_branch
      %10 = sbr.rel (0) target = $region5
    $region4: #{tpu_custom_call.1} parent=1 // pred_region
      _
    $region5: #{tpu_custom_call.1} parent=1 // pred_fallthru
      _
    // Predicated region
    $region6: #{tpu_custom_call.1} parent=1 // pred_check
      _
    $region7: #{tpu_custom_call.1} parent=1 // pred_check_branch
      %12 = sbr.rel (0) target = $region9
    $region8: #{tpu_custom_call.1} parent=1 // pred_region
      _
    $region9: #{tpu_custom_call.1} parent=1 // pred_fallthru
      _
    // Predicated region
    $region10: #{tpu_custom_call.1} parent=1 // pred_check
      _
    $region11: #{tpu_custom_call.1} parent=1 // pred_check_branch
      %14 = sbr.rel (0) target = $region13
    $region12: #{tpu_custom_call.1} parent=1 // pred_region
      _
    $region13: #{tpu_custom_call.1} parent=1 // pred_fallthru
      _
    %v15 = vld [vmem:[%s2] sm:$0x3]
    %v16 = vld [vmem:[%s0] sm:$0xff]
    %v17 = vld [vmem:[%s0 + $0x8] sm:$0xff]
    %v18 = vld [vmem:[%s0 + $0x10] sm:$0xff]
    %v19 = vld [vmem:[%s0 + $0x18] sm:$0xff]
    %v20 = vld [vmem:[%s0 + $0x20] sm:$0xff]
    %v21 = vld [vmem:[%s0 + $0x28] sm:$0xff]
    %v22 = vld [vmem:[%s0 + $0x30] sm:$0xff]
    %v23 = vld [vmem:[%s0 + $0x38] sm:$0xff]
    %v24 = vld [vmem:[%s0 + $0x40] sm:$0xff]
    %v25 = vld [vmem:[%s0 + $0x48] sm:$0xff]
    %v26 = vld [vmem:[%s0 + $0x50] sm:$0xff]
    %v27 = vld [vmem:[%s0 + $0x58] sm:$0xff]
    %v28 = vld [vmem:[%s0 + $0x60] sm:$0xff]
    %v29 = vld [vmem:[%s0 + $0x68] sm:$0xff]
    %v30 = vld [vmem:[%s0 + $0x70] sm:$0xff]
    %v31 = vld [vmem:[%s0 + $0x78] sm:$0xff]
    %v32 = vld [vmem:[%s1] sm:$0x1]
    %v34 = vperm.slane %v32, 0
    %36 = vmatpush.msra.mxu0 %v31
    %37 = vmatpush.msra.mxu0 %v30
    %38 = vmatpush.msra.mxu0 %v29
    %39 = vmatpush.msra.mxu0 %v28
    %40 = vmatpush.msra.mxu0 %v27
    %41 = vmatpush.msra.mxu0 %v26
    %42 = vmatpush.msra.mxu0 %v25
    %43 = vmatpush.msra.mxu0 %v24
    %44 = vmatpush.msra.mxu0 %v23
    %45 = vmatpush.msra.mxu0 %v22
    %46 = vmatpush.msra.mxu0 %v21
    %47 = vmatpush.msra.mxu0 %v20
    %48 = vmatpush.msra.mxu0 %v19
    %49 = vmatpush.msra.mxu0 %v18
    %50 = vmatpush.msra.mxu0 %v17
    %51 = vmatpush.msra.mxu0 %v16
    %52 = vmatmul.f32.gmra.mxu0 %v15
    %v53 = vpop.f32.mrf.mxu0
    %v54 = vadd.f32 %v34, %v53
    %55 = vdwg.mxu0
    %vm56 = vcmask 517120
    %57 = vst.msk [vmem:[#allocation2] sm:$0x3] %vm56, %v54
    // Predicated region
    $region14: #{tpu_custom_call.1} parent=1 // pred_check
      _
    $region15: #{tpu_custom_call.1} parent=1 // pred_check_branch
      %59 = sbr.rel (0) target = $region17
    $region16: #{tpu_custom_call.1} parent=1 // pred_region
      %61 = vsyncadd [#allocation3], 0
      %s63 = sshll.u32 [#allocation2], 4
      %s64 = int_to_ptr.vmem [resolvable:$true] %s63
      %s65 = sshll.u32 %s3, 4
      %s66 = int_to_ptr.hbm [resolvable:$true] %s65
      %68 = dma.vmem_to_hbm [thread:$0]  %s64, 32, %s66, [#allocation3]
    $region17: #{tpu_custom_call.1} parent=1 // pred_fallthru
      _
    // Predicated region
    $region18: #{tpu_custom_call.1} parent=1 // pred_check
      _
    $region19: #{tpu_custom_call.1} parent=1 // pred_check_branch
      %70 = sbr.rel (0) target = $region21
    $region20: #{tpu_custom_call.1} parent=1 // pred_region
      %72 = dma.done [#allocation3], 32
    $region21: #{tpu_custom_call.1} parent=1 // pred_fallthru
      _
    %73 = vsyncpa [#allocation3], 1

</llo_original>
